<compile_context>
chip_gen: v7x
topology: tpu7x:2x2x1
jax: 0.10.0
libtpu: 0.0.40
codegen_flags: <defaults>
</compile_context>

<pallas_src>
import functools
import math

import jax
import jax.numpy as jnp
from jax.experimental import pallas as pl
from jax.experimental.pallas import tpu as pltpu

_LANE = 128
_SUBLANE_BY_ITEMSIZE = {4: 8, 2: 16, 1: 32}   # dtype-aware sublane packing
_MAX_BLOCK_COLS = 4096                        # lane-dense width cap (multiple of 128)


def _temperature_kernel(inv_ref, x_ref, o_ref):
    # Scalar reciprocal lives in SMEM; one VPU multiply per vreg.
    # Compute in f32 (upcast -> multiply -> downcast) so sub-32-bit dtypes
    # match `x / tem` within their native precision on all generations.
    inv = inv_ref[0, 0]
    o_ref[...] = (x_ref[...].astype(jnp.float32) * inv).astype(o_ref.dtype)


@functools.lru_cache(maxsize=1)
def _tile_and_vmem_budget():
    """Generation-dependent (per-buffer tile bytes, scoped vmem limit)."""
    vmem = None
    try:
        vmem = getattr(pltpu.get_tpu_info(), "vmem_capacity_bytes", None)
    except Exception:
        vmem = None
    if vmem is not None and vmem >= 128 * 1024 * 1024:
        # v5e / v6e (128 MiB VMEM): 16 MiB tiles -> 2 arrays x 2 bufs = 64 MiB.
        return 16 * 1024 * 1024, 96 * 1024 * 1024
    # v7x (64 MiB per TensorCore) or unknown hardware: stay conservative.
    return 8 * 1024 * 1024, 48 * 1024 * 1024


def _lane_dense_cols(total):
    """Largest multiple of 128 (<= _MAX_BLOCK_COLS) that divides `total`."""
    if total % _LANE != 0:
        return None
    k_max = min(total // _LANE, _MAX_BLOCK_COLS // _LANE)
    for k in range(k_max, 0, -1):
        c = k * _LANE
        if total % c == 0:
            return c
    return None


def _run_pallas_2d(x2, inv_arr, donate=False):
    """Run the scale kernel on a 2D (rows, cols) view with lane-dense cols."""
    rows, cols = x2.shape
    itemsize = jnp.dtype(x2.dtype).itemsize
    sublane = _SUBLANE_BY_ITEMSIZE.get(itemsize, 8)
    target_tile_bytes, vmem_cap = _tile_and_vmem_budget()

    # Column block: full width if it fits the cap, else a 128-multiple.
    tc = cols if cols <= _MAX_BLOCK_COLS else _MAX_BLOCK_COLS

    # Row block: target the per-generation tile size, dtype-aware sublane step.
    tr = max(1, target_tile_bytes // (tc * itemsize))
    if tr >= rows:
        tr = rows                       # equal to full dim -> always legal
    else:
        tr = max(sublane, (tr // sublane) * sublane)

    grid_rows = pl.cdiv(rows, tr)
    grid_cols = pl.cdiv(cols, tc)

    tile_bytes = tr * tc * itemsize
    # in + out, double buffered, ~25% headroom; capped per generation.
    vmem_limit = min(
        vmem_cap,
        max(32 * 1024 * 1024, int(2 * 2 * tile_bytes * 1.25) + (1 << 20)),
    )

    if grid_cols == 1:
        grid = (grid_rows,)
        index_map = lambda i: (i, 0)
        dims = ("parallel",)
    else:
        grid = (grid_rows, grid_cols)
        index_map = lambda i, j: (i, j)
        dims = ("parallel", "parallel")

    return pl.pallas_call(
        _temperature_kernel,
        out_shape=jax.ShapeDtypeStruct((rows, cols), x2.dtype),
        grid=grid,
        in_specs=[
            pl.BlockSpec(memory_space=pltpu.MemorySpace.SMEM),  # inv scalar
            pl.BlockSpec((tr, tc), index_map),                  # x tile
        ],
        out_specs=pl.BlockSpec((tr, tc), index_map),
        input_output_aliases=({1: 0} if donate else {}),
        compiler_params=pltpu.CompilerParams(
            dimension_semantics=dims,
            vmem_limit_bytes=vmem_limit,
        ),
    )(inv_arr, x2)


def temperature_forward(x, tem, donate=False):
    """Pallas equivalent of `temperature(tem).forward(x)` == x / tem.

    `tem` may be a Python float or a JAX scalar; its value is passed at
    runtime (SMEM scalar), so distinct temperatures do not recompile.
    Set donate=True only if the caller no longer needs `x` (output reuses
    x's HBM buffer).
    """
    orig_shape = x.shape
    total = math.prod(orig_shape) if x.ndim > 0 else 1
    inv_arr = (1.0 / jnp.asarray(tem, jnp.float32)).reshape(1, 1)

    if total == 0:
        return x
    if total < _LANE:
        # Too small for a kernel launch to be worthwhile.
        return (x.astype(jnp.float32) * inv_arr[0, 0]).astype(x.dtype)

    cols = _lane_dense_cols(total)
    if cols is not None:
        # Lane-dense 2D view: full unmasked vst stores.
        x2 = x.reshape(total // cols, cols)
        out2 = _run_pallas_2d(x2, inv_arr, donate=donate)
        return out2.reshape(orig_shape)

    # Element count not divisible by 128: run the kernel on the 128-aligned
    # prefix (lane-dense, unmasked stores) and do the <128-element tail with
    # plain jnp outside the kernel.
    main = (total // _LANE) * _LANE
    x_flat = x.reshape(total)
    head_cols = _lane_dense_cols(main)           # guaranteed non-None (main % 128 == 0)
    head2 = x_flat[:main].reshape(main // head_cols, head_cols)
    out_head = _run_pallas_2d(head2, inv_arr).reshape(main)
    out_tail = (x_flat[main:].astype(jnp.float32) * inv_arr[0, 0]).astype(x.dtype)
    return jnp.concatenate([out_head, out_tail]).reshape(orig_shape)


if __name__ == "__main__":
    key = jax.random.PRNGKey(0)
    tem = 0.07  # deterministic "parameter" from __init__(tem)

    # ---- f32, 128-divisible shape (feature tensor) ------------------------
    x = jax.random.normal(key, (2, 4, 16, 16), dtype=jnp.float32)
    out = jax.block_until_ready(temperature_forward(x, tem))
    ref = x / tem
    assert out.shape == x.shape and out.dtype == x.dtype
    assert jnp.allclose(out, ref, rtol=1e-6, atol=1e-6), "f32 mismatch vs reference"

    # ---- same value, different temperature: no recompile dependence -------
    out2 = jax.block_until_ready(temperature_forward(x, 0.5))
    assert jnp.allclose(out2, x / 0.5, rtol=1e-6, atol=1e-6), "f32 mismatch (tem=0.5)"

    # ---- bf16 path ---------------------------------------------------------
    x_bf16 = x.astype(jnp.bfloat16)
    out_bf16 = jax.block_until_ready(temperature_forward(x_bf16, tem))
    ref_bf16 = (x_bf16.astype(jnp.float32) / tem).astype(jnp.bfloat16)
    assert out_bf16.dtype == jnp.bfloat16
    assert jnp.allclose(out_bf16.astype(jnp.float32),
                        ref_bf16.astype(jnp.float32),
                        rtol=2e-2, atol=2e-2), "bf16 mismatch vs reference"

    # ---- non-128-divisible element count (prefix kernel + jnp tail) --------
    x_odd = jax.random.normal(jax.random.PRNGKey(1), (2, 3, 67), dtype=jnp.float32)
    out_odd = jax.block_until_ready(temperature_forward(x_odd, tem))
    assert out_odd.shape == x_odd.shape and out_odd.dtype == x_odd.dtype
    assert jnp.allclose(out_odd, x_odd / tem, rtol=1e-6, atol=1e-6), \
        "mismatch on non-128-divisible shape"

    print("KERNEL_OK")
</pallas_src>

<mosaic_0001>
module attributes {stable_mosaic.version = 11 : i64} {
  func.func @_temperature_kernel(%arg0: i32, %arg1: memref<1x1xf32, #tpu.memory_space<smem>>, %arg2: memref<1x2048xf32, #tpu.memory_space<vmem>>, %arg3: memref<1x2048xf32, #tpu.memory_space<vmem>>) attributes {dimension_semantics = [#tpu.dimension_semantics<parallel>], iteration_bounds = array<i64: 1>, scalar_prefetch = 0 : i64, scratch_operands = 0 : i64, tpu.core_type = #tpu.core_type<tc>, window_params = [{transform_indices = @transform_0, window_bounds = array<i64: 1, 1>}, {transform_indices = @transform_1, window_bounds = array<i64: 1, 2048>}, {transform_indices = @transform_2, window_bounds = array<i64: 1, 2048>}]} {
    %c0 = arith.constant 0 : index
    %c0_0 = arith.constant 0 : index
    %0 = memref.load %arg1[%c0, %c0_0] : memref<1x1xf32, #tpu.memory_space<smem>>
    %c0_1 = arith.constant 0 : index
    %c0_2 = arith.constant 0 : index
    %1 = vector.load %arg2[%c0_1, %c0_2] : memref<1x2048xf32, #tpu.memory_space<vmem>>, vector<1x2048xf32>
    %2 = vector.broadcast %0 : f32 to vector<1x2048xf32>
    %3 = arith.mulf %1, %2 : vector<1x2048xf32>
    %c0_3 = arith.constant 0 : index
    %c0_4 = arith.constant 0 : index
    %4 = vector.load %arg3[%c0_3, %c0_4] : memref<1x2048xf32, #tpu.memory_space<vmem>>, vector<1x2048xf32>
    tpu.vector_store %arg3[%c0_3, %c0_4], %3 {strides = array<i32>} : memref<1x2048xf32, #tpu.memory_space<vmem>>, vector<1x2048xf32>,
    return
  }
  func.func @transform_0(%arg0: i32) -> (i32, i32) {
    %c0_i32 = arith.constant 0 : i32
    %c0_i32_0 = arith.constant 0 : i32
    %c0_i32_1 = arith.constant 0 : i32
    return %c0_i32, %c0_i32_0 : i32, i32
  }
  func.func @transform_1(%arg0: i32) -> (i32, i32) {
    %c0_i32 = arith.constant 0 : i32
    %c0_i32_0 = arith.constant 0 : i32
    return %arg0, %c0_i32 : i32, i32
  }
  func.func @transform_2(%arg0: i32) -> (i32, i32) {
    %c0_i32 = arith.constant 0 : i32
    %c0_i32_0 = arith.constant 0 : i32
    return %arg0, %c0_i32 : i32, i32
  }
}

</mosaic_0001>

<llo_original>
// kernel: tpu_custom_call.1
$region0: #{tpu_custom_call.1}
  #allocation0 [shape = 'u32[]', space=smem, size = 0x4, offset = 0x4, fixed_abs, tag = 'smem constant byte address 0x4 - core index']
  #allocation1 [shape = 'u32[144,128]{1,0:T(1,128)}', space=vmem, size = 0x12000, scoped, tag = 'internal scratch']
  #allocation2 [shape = 'f32[1,1]{1,0:T(1,128)S(6)}', space=smem, size = 0x200, scoped, tag = 'scoped memory for tpu_custom_call.1']
  %s0 = inlined_call_operand.<no memory space> [shape: f32[1,1], index: 0, kind: input, shape index: {}]
  %s1 = inlined_call_operand.hbm [shape: f32[1,2048], index: 1, kind: input, shape index: {}]
  %s2 = inlined_call_operand.hbm [shape: f32[1,2048], index: 2, kind: output, shape index: {}]
  %s3 = sld [smem:[#allocation0]]
  $region22: #{tpu_custom_call.1} parent=0
    _
  %s5 = ssub.s32 1, %s3
  %s6 = scalar_select 0, %s5, %s3
  %7 = sst [smem:[#allocation2]] %s0
  $region1: #{tpu_custom_call.1} parent=0
    #allocation3 [shape = 'u8[8192]{0}', space=vmem, size = 0x2000, scoped, tag = 'input window, operand 1, single buffered']
    #allocation4 [shape = 's32[1]{0}', space=sflag, size = 0x4, scoped, tag = 'scoped memory for tpu_custom_call.1']
    #allocation5 [shape = 's32[1]{0}', space=sflag, size = 0x4, scoped, tag = 'scoped memory for tpu_custom_call.1']
    #allocation6 [shape = 'u8[8192]{0}', space=vmem, size = 0x2000, scoped, tag = 'output window, operand 0, single buffered']
    %8 = vsyncpa [#allocation4], 0
    %9 = vsyncpa [#allocation5], 0
    // Predicated region
    $region2: #{tpu_custom_call.1} parent=1 // pred_check
      _
    $region3: #{tpu_custom_call.1} parent=1 // pred_check_branch
      %11 = sbr.rel (0) target = $region5
    $region4: #{tpu_custom_call.1} parent=1 // pred_region
      _
    $region5: #{tpu_custom_call.1} parent=1 // pred_fallthru
      _
    // Predicated region
    $region6: #{tpu_custom_call.1} parent=1 // pred_check
      _
    $region7: #{tpu_custom_call.1} parent=1 // pred_check_branch
      %13 = sbr.rel (0) target = $region9
    $region8: #{tpu_custom_call.1} parent=1 // pred_region
      %s15 = ssub.s32 256, 256
      %16 = vsyncadd [#allocation4], %s15
      %s18 = sshll.u32 [#allocation3], 4
      %s19 = int_to_ptr.vmem [resolvable:$true] %s18
      %21 = dma.hbm_to_vmem [thread:$0]  %s1, 256, %s19, [#allocation4]
    $region9: #{tpu_custom_call.1} parent=1 // pred_fallthru
      _
    // Predicated region
    $region10: #{tpu_custom_call.1} parent=1 // pred_check
      _
    $region11: #{tpu_custom_call.1} parent=1 // pred_check_branch
      %23 = sbr.rel (0) target = $region13
    $region12: #{tpu_custom_call.1} parent=1 // pred_region
      %24 = dma.done [#allocation4], 256
    $region13: #{tpu_custom_call.1} parent=1 // pred_fallthru
      _
    %s25 = sld [smem:[#allocation2]]
    %v26 = vld [vmem:[#allocation3] sm:$0xff]
    %v27 = vld [vmem:[#allocation3 + $0x8] sm:$0xff]
    %v28 = vstv %s25
    %v29 = vmul.f32 %v26, %v28
    %v30 = vmul.f32 %v27, %v28
    %31 = vst [vmem:[#allocation6] sm:$0xff] %v29
    %32 = vst [vmem:[#allocation6 + $0x8] sm:$0xff] %v30
    // Predicated region
    $region14: #{tpu_custom_call.1} parent=1 // pred_check
      _
    $region15: #{tpu_custom_call.1} parent=1 // pred_check_branch
      %34 = sbr.rel (0) target = $region17
    $region16: #{tpu_custom_call.1} parent=1 // pred_region
      %s36 = ssub.s32 256, 256
      %37 = vsyncadd [#allocation5], %s36
      %s39 = sshll.u32 [#allocation6], 4
      %s40 = int_to_ptr.vmem [resolvable:$true] %s39
      %42 = dma.vmem_to_hbm [thread:$0]  %s40, 256, %s2, [#allocation5]
    $region17: #{tpu_custom_call.1} parent=1 // pred_fallthru
      _
    // Predicated region
    $region18: #{tpu_custom_call.1} parent=1 // pred_check
      _
    $region19: #{tpu_custom_call.1} parent=1 // pred_check_branch
      %44 = sbr.rel (0) target = $region21
    $region20: #{tpu_custom_call.1} parent=1 // pred_region
      %45 = dma.done [#allocation5], 256
    $region21: #{tpu_custom_call.1} parent=1 // pred_fallthru
      _
    %46 = vsyncpa [#allocation4], 1
    %47 = vsyncpa [#allocation5], 1

</llo_original>
